<compile_context>
chip_gen: v7x
topology: tpu7x:2x2x1
jax: 0.10.0
libtpu: 0.0.40
codegen_flags: <defaults>
</compile_context>

<pallas_src>
import math

import jax
import jax.numpy as jnp
from jax.experimental import pallas as pl
from jax.experimental.pallas import tpu as pltpu


def _round_up(x, m):
    return ((x + m - 1) // m) * m


def _default_tiles():
    """Per-generation (tm, tn, tk, vmem_limit_bytes)."""
    try:
        kind = jax.devices()[0].device_kind.lower()
    except Exception:
        kind = ""
    if "v6" in kind:
        # Worst flops:bandwidth ratio -> largest tiles (~23 MiB VMEM w/ bf16 out).
        return 1024, 2048, 512, 64 * 1024 * 1024
    if "v7" in kind:
        # 3.2 TB/s per-TC HBM: moderate tiles already saturate the MXU; stay
        # well under the 64 MiB/TC (32 MiB scoped default) VMEM.
        return 512, 1024, 512, 40 * 1024 * 1024
    # v5e and generic fallback.
    return 512, 1024, 512, 48 * 1024 * 1024


def _lora_linear_kernel(x_ref, w_ref, b_ref, xa_ref, blora_ref, o_ref, acc_ref):
    """Fused base-linear + LoRA epilogue, K-tiled.

    Grid = (M//tm, N//tn, K//tk); K is the innermost (reduction) axis.
      acc_ref: (tm, tn) f32 accumulator for x @ W^T.
    xa = x @ A is precomputed in the wrapper (resident across j/k);
    alpha is folded into blora_ref (= alpha * B).
    """
    k = pl.program_id(2)

    @pl.when(k == 0)
    def _init():
        acc_ref[...] = jnp.zeros_like(acc_ref)

    acc_ref[...] += jnp.dot(x_ref[...], w_ref[...],
                            preferred_element_type=jnp.float32)

    @pl.when(k == pl.num_programs(2) - 1)
    def _finalize():
        lora = jnp.dot(xa_ref[...], blora_ref[...],
                       preferred_element_type=jnp.float32)
        o_ref[...] = (acc_ref[...] + lora + b_ref[...]).astype(o_ref.dtype)


def make_lora_linear(weight, bias, A, B, alpha, *,
                     out_dtype=jnp.bfloat16, compute_dtype=jnp.bfloat16,
                     tm=None, tn=None, tk=None, vmem_limit_bytes=None):
    """Prepare static (weight-side) operands once and return apply(x).

    weight: (out_dim, in_dim)   torch.nn.Linear convention
    bias:   (out_dim,)
    A:      (in_dim, rank)
    B:      (rank, out_dim)
    alpha:  python float
    """
    d_tm, d_tn, d_tk, d_vmem = _default_tiles()
    tm = d_tm if tm is None else tm
    tn = d_tn if tn is None else tn
    tk = d_tk if tk is None else tk
    vmem_limit_bytes = d_vmem if vmem_limit_bytes is None else vmem_limit_bytes

    out_dim, in_dim = weight.shape
    rank = A.shape[1]

    # Clamp weight-side tile dims to the (padded) problem, respecting (8, 128).
    tn_c = min(tn, _round_up(out_dim, 128))
    tk_c = min(tk, _round_up(in_dim, 128))
    N_p = _round_up(out_dim, tn_c)
    K_p = _round_up(in_dim, tk_c)
    R_p = _round_up(rank, 128)              # lane-dense LoRA rank (zero padded)

    f32 = jnp.float32

    # --- Static operand prep: done ONCE, reused across calls. ---------------
    w_t = jnp.pad(weight.T.astype(compute_dtype),
                  ((0, K_p - in_dim), (0, N_p - out_dim)))          # (K_p, N_p)
    b2d = jnp.pad(bias.astype(f32).reshape(1, out_dim),
                  ((0, 0), (0, N_p - out_dim)))                     # (1,  N_p)
    a_p = jnp.pad(A.astype(compute_dtype),
                  ((0, K_p - in_dim), (0, R_p - rank)))             # (K_p, R_p)
    # Fold alpha into the tiny B operand (scales (rank, out), not (M, out)).
    b_lora = jnp.pad((jnp.float32(alpha) * B.astype(f32)).astype(compute_dtype),
                     ((0, R_p - rank), (0, N_p - out_dim)))         # (R_p, N_p)

    out_itemsize = jnp.dtype(out_dtype).itemsize
    in_itemsize = jnp.dtype(compute_dtype).itemsize

    def apply(x):
        *lead, k_in = x.shape
        assert k_in == in_dim, f"expected last dim {in_dim}, got {k_in}"
        M = math.prod(lead) if lead else 1

        tm_c = min(tm, _round_up(M, 8))
        M_p = _round_up(M, tm_c)

        # Per-call work: only x is cast + padded.
        x2d = jnp.pad(x.reshape(M, in_dim).astype(compute_dtype),
                      ((0, M_p - M), (0, K_p - in_dim)))            # (M_p, K_p)

        # Hoisted LoRA down-projection: tiny (M_p, R_p) matmul in plain XLA,
        # so the kernel never recomputes x@A per (j, k) step.
        xa = jnp.dot(x2d, a_p,
                     preferred_element_type=jnp.float32).astype(compute_dtype)

        grid_m = M_p // tm_c
        grid_n = N_p // tn_c
        grid_k = K_p // tk_c

        flops = 2 * M_p * K_p * N_p + 2 * M_p * R_p * N_p
        bytes_accessed = (
            M_p * K_p * in_itemsize * grid_n        # x re-streamed per N tile
            + K_p * N_p * in_itemsize * grid_m      # W^T re-streamed per M tile
            + M_p * R_p * in_itemsize               # xa: once per M tile (resident)
            + R_p * N_p * in_itemsize * grid_m      # alpha*B per M tile
            + N_p * 4 * grid_m                      # bias per M tile
            + M_p * N_p * out_itemsize)             # output writeback

        out2d = pl.pallas_call(
            _lora_linear_kernel,
            out_shape=jax.ShapeDtypeStruct((M_p, N_p), out_dtype),
            grid_spec=pltpu.PrefetchScalarGridSpec(
                num_scalar_prefetch=0,
                grid=(grid_m, grid_n, grid_k),
                in_specs=[
                    pl.BlockSpec((tm_c, tk_c), lambda i, j, k: (i, k)),  # x
                    pl.BlockSpec((tk_c, tn_c), lambda i, j, k: (k, j)),  # W^T
                    pl.BlockSpec((1, tn_c), lambda i, j, k: (0, j)),     # bias
                    pl.BlockSpec((tm_c, R_p), lambda i, j, k: (i, 0)),   # x @ A
                    pl.BlockSpec((R_p, tn_c), lambda i, j, k: (0, j)),   # alpha*B
                ],
                out_specs=pl.BlockSpec((tm_c, tn_c), lambda i, j, k: (i, j)),
                scratch_shapes=[
                    pltpu.VMEM((tm_c, tn_c), jnp.float32),  # base GEMM accumulator
                ],
            ),
            compiler_params=pltpu.CompilerParams(
                dimension_semantics=("parallel", "parallel", "arbitrary"),
                vmem_limit_bytes=vmem_limit_bytes,
            ),
            cost_estimate=pl.CostEstimate(
                flops=flops, transcendentals=0, bytes_accessed=bytes_accessed),
        )(x2d, w_t, b2d, xa, b_lora)

        return out2d[:M, :out_dim].reshape(*lead, out_dim)

    return apply


def linear_with_lora(x, weight, bias, A, B, alpha, **kwargs):
    """One-shot convenience wrapper (prep + apply in one call)."""
    return make_lora_linear(weight, bias, A, B, alpha, **kwargs)(x)


if __name__ == "__main__":
    # Small shapes consistent with the module's forward (one LoRA-wrapped proj).
    batch, seq = 2, 8
    in_dim, out_dim = 32, 32
    rank = 4
    alpha = 2.0

    key = jax.random.PRNGKey(0)
    kx, kw, kb, ka, kbm = jax.random.split(key, 5)

    x = jax.random.normal(kx, (batch, seq, in_dim), dtype=jnp.float32)

    # Parameters mirroring the PyTorch module:
    #   linear: weight (out, in), bias (out,)
    #   LoRA:   A = randn(in, rank) / sqrt(rank);  B is zeros at init, but we
    #   use a small non-zero B here so the LoRA path is numerically exercised.
    weight = jax.random.normal(kw, (out_dim, in_dim), dtype=jnp.float32) * 0.05
    bias = jax.random.normal(kb, (out_dim,), dtype=jnp.float32) * 0.01
    std_dev = 1.0 / jnp.sqrt(jnp.float32(rank))
    A = jax.random.normal(ka, (in_dim, rank), dtype=jnp.float32) * std_dev
    B = jax.random.normal(kbm, (rank, out_dim), dtype=jnp.float32) * 0.05

    # Static weight prep done once; apply() reused per call (inference-style).
    lora_proj = make_lora_linear(weight, bias, A, B, alpha,
                                 out_dtype=jnp.bfloat16)
    out = lora_proj(x)
    out = jax.block_until_ready(out)

    # Plain-JAX f32 reference; the kernel uses bf16 MXU inputs with f32
    # accumulation and a bf16 output, so tolerance is relaxed accordingly.
    ref = x @ weight.T + bias + alpha * ((x @ A) @ B)
    assert out.shape == (batch, seq, out_dim)
    assert jnp.allclose(out.astype(jnp.float32), ref, atol=3e-2, rtol=3e-2), \
        "mismatch vs reference"

    # TODO(synk): the HF AutoModelForCausalLM backbone itself is not a Pallas
    # target; only the LinearWithLoRA forward (the part LoRA modifies) is fused.
    print("KERNEL_OK")
</pallas_src>

<mosaic_0001>
module attributes {stable_mosaic.version = 11 : i64} {
  func.func @_lora_linear_kernel(%arg0: i32, %arg1: i32, %arg2: i32, %arg3: memref<16x128xbf16, #tpu.memory_space<vmem>>, %arg4: memref<128x128xbf16, #tpu.memory_space<vmem>>, %arg5: memref<1x128xf32, #tpu.memory_space<vmem>>, %arg6: memref<16x128xbf16, #tpu.memory_space<vmem>>, %arg7: memref<128x128xbf16, #tpu.memory_space<vmem>>, %arg8: memref<16x128xbf16, #tpu.memory_space<vmem>>, %arg9: memref<16x128xf32, #tpu.memory_space<vmem>>) attributes {dimension_semantics = [#tpu.dimension_semantics<parallel>, #tpu.dimension_semantics<parallel>, #tpu.dimension_semantics<arbitrary>], iteration_bounds = array<i64: 1, 1, 1>, scalar_prefetch = 0 : i64, scratch_operands = 1 : i64, tpu.core_type = #tpu.core_type<tc>, window_params = [{transform_indices = @transform_0, window_bounds = array<i64: 16, 128>}, {transform_indices = @transform_1, window_bounds = array<i64: 128, 128>}, {transform_indices = @transform_2, window_bounds = array<i64: 1, 128>}, {transform_indices = @transform_3, window_bounds = array<i64: 16, 128>}, {transform_indices = @transform_4, window_bounds = array<i64: 128, 128>}, {transform_indices = @transform_5, window_bounds = array<i64: 16, 128>}]} {
    %c0_i32 = arith.constant 0 : i32
    %0 = arith.cmpi eq, %arg2, %c0_i32 : i32
    %1 = arith.extui %0 : i1 to i32
    %c0_i32_0 = arith.constant 0 : i32
    %2 = arith.cmpi ne, %1, %c0_i32_0 : i32
    scf.if %2 {
      %cst_10 = arith.constant 0.000000e+00 : f32
      %12 = vector.broadcast %cst_10 : f32 to vector<16x128xf32>
      %c0_11 = arith.constant 0 : index
      %c0_12 = arith.constant 0 : index
      %13 = vector.load %arg9[%c0_11, %c0_12] : memref<16x128xf32, #tpu.memory_space<vmem>>, vector<16x128xf32>
      tpu.vector_store %arg9[%c0_11, %c0_12], %12 {strides = array<i32>} : memref<16x128xf32, #tpu.memory_space<vmem>>, vector<16x128xf32>,
    } else {
    }
    %c0 = arith.constant 0 : index
    %c0_1 = arith.constant 0 : index
    %3 = vector.load %arg9[%c0, %c0_1] : memref<16x128xf32, #tpu.memory_space<vmem>>, vector<16x128xf32>
    %c0_2 = arith.constant 0 : index
    %c0_3 = arith.constant 0 : index
    %4 = vector.load %arg3[%c0_2, %c0_3] : memref<16x128xbf16, #tpu.memory_space<vmem>>, vector<16x128xbf16>
    %c0_4 = arith.constant 0 : index
    %c0_5 = arith.constant 0 : index
    %5 = vector.load %arg4[%c0_4, %c0_5] : memref<128x128xbf16, #tpu.memory_space<vmem>>, vector<128x128xbf16>
    %cst = arith.constant dense<0.000000e+00> : vector<16x128xf32>
    %6 = tpu.matmul %4, %5, %cst {dimension_numbers = #tpu.dot_dimension_numbers<[1], [0], [0], [1], [0, 0, 1, 1], [], []>} : vector<16x128xbf16>, vector<128x128xbf16>, vector<16x128xf32> -> vector<16x128xf32>
    %7 = arith.addf %3, %6 : vector<16x128xf32>
    %c0_6 = arith.constant 0 : index
    %c0_7 = arith.constant 0 : index
    %8 = vector.load %arg9[%c0_6, %c0_7] : memref<16x128xf32, #tpu.memory_space<vmem>>, vector<16x128xf32>
    tpu.vector_store %arg9[%c0_6, %c0_7], %7 {strides = array<i32>} : memref<16x128xf32, #tpu.memory_space<vmem>>, vector<16x128xf32>,
    %c0_i32_8 = arith.constant 0 : i32
    %9 = arith.cmpi eq, %arg2, %c0_i32_8 : i32
    %10 = arith.extui %9 : i1 to i32
    %c0_i32_9 = arith.constant 0 : i32
    %11 = arith.cmpi ne, %10, %c0_i32_9 : i32
    scf.if %11 {
      %c0_10 = arith.constant 0 : index
      %c0_11 = arith.constant 0 : index
      %12 = vector.load %arg6[%c0_10, %c0_11] : memref<16x128xbf16, #tpu.memory_space<vmem>>, vector<16x128xbf16>
      %c0_12 = arith.constant 0 : index
      %c0_13 = arith.constant 0 : index
      %13 = vector.load %arg7[%c0_12, %c0_13] : memref<128x128xbf16, #tpu.memory_space<vmem>>, vector<128x128xbf16>
      %cst_14 = arith.constant dense<0.000000e+00> : vector<16x128xf32>
      %14 = tpu.matmul %12, %13, %cst_14 {dimension_numbers = #tpu.dot_dimension_numbers<[1], [0], [0], [1], [0, 0, 1, 1], [], []>} : vector<16x128xbf16>, vector<128x128xbf16>, vector<16x128xf32> -> vector<16x128xf32>
      %c0_15 = arith.constant 0 : index
      %c0_16 = arith.constant 0 : index
      %15 = vector.load %arg9[%c0_15, %c0_16] : memref<16x128xf32, #tpu.memory_space<vmem>>, vector<16x128xf32>
      %16 = arith.addf %15, %14 : vector<16x128xf32>
      %c0_17 = arith.constant 0 : index
      %c0_18 = arith.constant 0 : index
      %17 = vector.load %arg5[%c0_17, %c0_18] : memref<1x128xf32, #tpu.memory_space<vmem>>, vector<1x128xf32>
      %18 = vector.broadcast %17 : vector<1x128xf32> to vector<16x128xf32>
      %19 = arith.addf %16, %18 : vector<16x128xf32>
      %20 = arith.truncf %19 : vector<16x128xf32> to vector<16x128xbf16>
      %c0_19 = arith.constant 0 : index
      %c0_20 = arith.constant 0 : index
      %21 = vector.load %arg8[%c0_19, %c0_20] : memref<16x128xbf16, #tpu.memory_space<vmem>>, vector<16x128xbf16>
      tpu.vector_store %arg8[%c0_19, %c0_20], %20 {strides = array<i32>} : memref<16x128xbf16, #tpu.memory_space<vmem>>, vector<16x128xbf16>,
    } else {
    }
    return
  }
  func.func @transform_0(%arg0: i32, %arg1: i32, %arg2: i32) -> (i32, i32) {
    %c0_i32 = arith.constant 0 : i32
    return %arg0, %arg2 : i32, i32
  }
  func.func @transform_1(%arg0: i32, %arg1: i32, %arg2: i32) -> (i32, i32) {
    %c0_i32 = arith.constant 0 : i32
    return %arg2, %arg1 : i32, i32
  }
  func.func @transform_2(%arg0: i32, %arg1: i32, %arg2: i32) -> (i32, i32) {
    %c0_i32 = arith.constant 0 : i32
    %c0_i32_0 = arith.constant 0 : i32
    return %c0_i32, %arg1 : i32, i32
  }
  func.func @transform_3(%arg0: i32, %arg1: i32, %arg2: i32) -> (i32, i32) {
    %c0_i32 = arith.constant 0 : i32
    %c0_i32_0 = arith.constant 0 : i32
    return %arg0, %c0_i32 : i32, i32
  }
  func.func @transform_4(%arg0: i32, %arg1: i32, %arg2: i32) -> (i32, i32) {
    %c0_i32 = arith.constant 0 : i32
    %c0_i32_0 = arith.constant 0 : i32
    return %c0_i32, %arg1 : i32, i32
  }
  func.func @transform_5(%arg0: i32, %arg1: i32, %arg2: i32) -> (i32, i32) {
    %c0_i32 = arith.constant 0 : i32
    return %arg0, %arg1 : i32, i32
  }
}

</mosaic_0001>

<llo_original>
// kernel: tpu_custom_call.1
$region0: #{tpu_custom_call.1}
  #allocation0 [shape = 'u32[]', space=smem, size = 0x4, offset = 0x4, fixed_abs, tag = 'smem constant byte address 0x4 - core index']
  #allocation1 [shape = 'u32[144,128]{1,0:T(1,128)}', space=vmem, size = 0x12000, scoped, tag = 'internal scratch']
  #allocation2 [shape = 'f32[16,128]{1,0:T(8,128)}', space=vmem, size = 0x2000, scoped, tag = 'scratch operand']
  %s0 = inlined_call_operand.hbm [shape: bf16[16,128], index: 0, kind: input, shape index: {}]
  %s1 = inlined_call_operand.hbm [shape: bf16[128,128], index: 1, kind: input, shape index: {}]
  %s2 = inlined_call_operand.vmem [shape: f32[1,128], index: 2, kind: input, shape index: {}]
  %s3 = inlined_call_operand.vmem [shape: bf16[16,128], index: 3, kind: input, shape index: {}]
  %s4 = inlined_call_operand.hbm [shape: bf16[128,128], index: 4, kind: input, shape index: {}]
  %s5 = inlined_call_operand.hbm [shape: bf16[16,128], index: 5, kind: output, shape index: {}]
  %s6 = sld [smem:[#allocation0]]
  $region50: #{tpu_custom_call.1} parent=0
    _
  %s8 = ssub.s32 1, %s6
  %s9 = scalar_select 0, %s8, %s6
  $region1: #{tpu_custom_call.1} parent=0
    #allocation3 [shape = 'u8[4096]{0}', space=vmem, size = 0x1000, scoped, tag = 'input window, operand 0, single buffered']
    #allocation4 [shape = 's32[1]{0}', space=sflag, size = 0x4, scoped, tag = 'scoped memory for tpu_custom_call.1']
    #allocation5 [shape = 's32[1]{0}', space=sflag, size = 0x4, scoped, tag = 'scoped memory for tpu_custom_call.1']
    #allocation6 [shape = 'u8[32768]{0}', space=vmem, size = 0x8000, scoped, tag = 'input window, operand 1, single buffered']
    #allocation7 [shape = 's32[1]{0}', space=sflag, size = 0x4, scoped, tag = 'scoped memory for tpu_custom_call.1']
    #allocation8 [shape = 'u8[32768]{0}', space=vmem, size = 0x8000, scoped, tag = 'input window, operand 4, single buffered']
    #allocation9 [shape = 'u8[4096]{0}', space=vmem, size = 0x1000, scoped, tag = 'output window, operand 0, single buffered']
    %10 = vsyncpa [#allocation4], 0
    %11 = vsyncpa [#allocation7], 0
    %12 = vsyncpa [#allocation5], 0
    // Predicated region
    $region2: #{tpu_custom_call.1} parent=1 // pred_check
      _
    $region3: #{tpu_custom_call.1} parent=1 // pred_check_branch
      %14 = sbr.rel (0) target = $region5
    $region4: #{tpu_custom_call.1} parent=1 // pred_region
      %s16 = ssub.s32 128, 128
      %17 = vsyncadd [#allocation4], %s16
      %s18 = sshll.u32 [#allocation3], 4
      %s19 = int_to_ptr.vmem [resolvable:$true] %s18
      %24 = dma.hbm_to_vmem [thread:$0]  %s0, 128, %s19, [#allocation4], 64, 64, 4
    $region5: #{tpu_custom_call.1} parent=1 // pred_fallthru
      _
    // Predicated region
    $region6: #{tpu_custom_call.1} parent=1 // pred_check
      _
    $region7: #{tpu_custom_call.1} parent=1 // pred_check_branch
      %26 = sbr.rel (0) target = $region9
    $region8: #{tpu_custom_call.1} parent=1 // pred_region
      %s28 = ssub.s32 1024, 1024
      %29 = vsyncadd [#allocation7], %s28
      %s30 = sshll.u32 [#allocation6], 4
      %s31 = int_to_ptr.vmem [resolvable:$true] %s30
      %36 = dma.hbm_to_vmem [thread:$0]  %s1, 1024, %s31, [#allocation7], 64, 64, 4
    $region9: #{tpu_custom_call.1} parent=1 // pred_fallthru
      _
    // Predicated region
    $region10: #{tpu_custom_call.1} parent=1 // pred_check
      _
    $region11: #{tpu_custom_call.1} parent=1 // pred_check_branch
      %38 = sbr.rel (0) target = $region13
    $region12: #{tpu_custom_call.1} parent=1 // pred_region
      _
    $region13: #{tpu_custom_call.1} parent=1 // pred_fallthru
      _
    // Predicated region
    $region14: #{tpu_custom_call.1} parent=1 // pred_check
      _
    $region15: #{tpu_custom_call.1} parent=1 // pred_check_branch
      %40 = sbr.rel (0) target = $region17
    $region16: #{tpu_custom_call.1} parent=1 // pred_region
      _
    $region17: #{tpu_custom_call.1} parent=1 // pred_fallthru
      _
    // Predicated region
    $region18: #{tpu_custom_call.1} parent=1 // pred_check
      _
    $region19: #{tpu_custom_call.1} parent=1 // pred_check_branch
      %42 = sbr.rel (0) target = $region21
    $region20: #{tpu_custom_call.1} parent=1 // pred_region
      %s44 = ssub.s32 1024, 1024
      %45 = vsyncadd [#allocation7], %s44
      %s46 = sshll.u32 [#allocation8], 4
      %s47 = int_to_ptr.vmem [resolvable:$true] %s46
      %52 = dma.hbm_to_vmem [thread:$0]  %s4, 1024, %s47, [#allocation7], 64, 64, 4
    $region21: #{tpu_custom_call.1} parent=1 // pred_fallthru
      _
    // Predicated region
    $region22: #{tpu_custom_call.1} parent=1 // pred_check
      _
    $region23: #{tpu_custom_call.1} parent=1 // pred_check_branch
      %54 = sbr.rel (0) target = $region25
    $region24: #{tpu_custom_call.1} parent=1 // pred_region
      %55 = dma.done [#allocation4], 128
    $region25: #{tpu_custom_call.1} parent=1 // pred_fallthru
      _
    // Predicated region
    $region26: #{tpu_custom_call.1} parent=1 // pred_check
      _
    $region27: #{tpu_custom_call.1} parent=1 // pred_check_branch
      %57 = sbr.rel (0) target = $region29
    $region28: #{tpu_custom_call.1} parent=1 // pred_region
      %58 = dma.done [#allocation7], 1024
    $region29: #{tpu_custom_call.1} parent=1 // pred_fallthru
      _
    // Predicated region
    $region30: #{tpu_custom_call.1} parent=1 // pred_check
      _
    $region31: #{tpu_custom_call.1} parent=1 // pred_check_branch
      %60 = sbr.rel (0) target = $region33
    $region32: #{tpu_custom_call.1} parent=1 // pred_region
      %61 = dma.done [#allocation7], 1024
    $region33: #{tpu_custom_call.1} parent=1 // pred_fallthru
      _
    %p63 = scmp.eq.s32.totalorder 0, 0
    // Predicated region
    $region34: #{tpu_custom_call.1} parent=1 // pred_check
      %p64 = pneg %p63
    $region35: #{tpu_custom_call.1} parent=1 // pred_check_branch
      %66 = sbr.rel (%p64) target = $region37
    $region36: #{tpu_custom_call.1} parent=1 // pred_region
      %67 = vst [vmem:[#allocation2] sm:$0xff] 0.0
      %68 = vst [vmem:[#allocation2 + $0x8] sm:$0xff] 0.0
    $region37: #{tpu_custom_call.1} parent=1 // pred_fallthru
      _
    %v69 = vld [vmem:[#allocation2] sm:$0xff]
    %v70 = vld [vmem:[#allocation2 + $0x8] sm:$0xff]
    %v71 = vld [vmem:[#allocation3] sm:$0xf]
    %v72 = vld [vmem:[#allocation3 + $0x4] sm:$0xf]
    %v73 = vld [vmem:[#allocation6] sm:$0xf]
    %v74 = vld [vmem:[#allocation6 + $0x4] sm:$0xf]
    %v75 = vld [vmem:[#allocation6 + $0x8] sm:$0xf]
    %v76 = vld [vmem:[#allocation6 + $0xc] sm:$0xf]
    %v77 = vld [vmem:[#allocation6 + $0x10] sm:$0xf]
    %v78 = vld [vmem:[#allocation6 + $0x14] sm:$0xf]
    %v79 = vld [vmem:[#allocation6 + $0x18] sm:$0xf]
    %v80 = vld [vmem:[#allocation6 + $0x1c] sm:$0xf]
    %v81 = vld [vmem:[#allocation6 + $0x20] sm:$0xf]
    %v82 = vld [vmem:[#allocation6 + $0x24] sm:$0xf]
    %v83 = vld [vmem:[#allocation6 + $0x28] sm:$0xf]
    %v84 = vld [vmem:[#allocation6 + $0x2c] sm:$0xf]
    %v85 = vld [vmem:[#allocation6 + $0x30] sm:$0xf]
    %v86 = vld [vmem:[#allocation6 + $0x34] sm:$0xf]
    %v87 = vld [vmem:[#allocation6 + $0x38] sm:$0xf]
    %v88 = vld [vmem:[#allocation6 + $0x3c] sm:$0xf]
    %v91 = vunpack.c.l.b16 %v71
    %v92 = vunpack.c.l.b16 %v72
    %v93 = vpack.c.b16 %v92, %v91
    %v111 = vunpack.c.l.b16 %v73
    %v112 = vunpack.c.l.b16 %v74
    %v113 = vunpack.c.l.b16 %v75
    %v114 = vunpack.c.l.b16 %v76
    %v115 = vunpack.c.l.b16 %v77
    %v116 = vunpack.c.l.b16 %v78
    %v117 = vunpack.c.l.b16 %v79
    %v118 = vunpack.c.l.b16 %v80
    %v119 = vunpack.c.l.b16 %v81
    %v120 = vunpack.c.l.b16 %v82
    %v121 = vunpack.c.l.b16 %v83
    %v122 = vunpack.c.l.b16 %v84
    %v123 = vunpack.c.l.b16 %v85
    %v124 = vunpack.c.l.b16 %v86
    %v125 = vunpack.c.l.b16 %v87
    %v126 = vunpack.c.l.b16 %v88
    %v127 = vpack.c.b16 %v112, %v111
    %v128 = vpack.c.b16 %v114, %v113
    %v129 = vpack.c.b16 %v116, %v115
    %v130 = vpack.c.b16 %v118, %v117
    %v131 = vpack.c.b16 %v120, %v119
    %v132 = vpack.c.b16 %v122, %v121
    %v133 = vpack.c.b16 %v124, %v123
    %v134 = vpack.c.b16 %v126, %v125
    %143 = vmatprep.subr.bf16.mxu0 0
    %144 = vmatpush1.bf16.msra.mxu0 %v127
    %145 = vmatprep.subr.bf16.mxu0 0
    %146 = vmatpush1.bf16.msra.mxu0 %v128
    %147 = vmatprep.subr.bf16.mxu0 0
    %148 = vmatpush1.bf16.msra.mxu0 %v129
    %149 = vmatprep.subr.bf16.mxu0 0
    %150 = vmatpush1.bf16.msra.mxu0 %v130
    %151 = vmatprep.subr.bf16.mxu0 0
    %152 = vmatpush1.bf16.msra.mxu0 %v131
    %153 = vmatprep.subr.bf16.mxu0 0
    %154 = vmatpush1.bf16.msra.mxu0 %v132
    %155 = vmatprep.subr.bf16.mxu0 0
    %156 = vmatpush1.bf16.msra.mxu0 %v133
    %157 = vmatprep.subr.bf16.mxu0 0
    %158 = vmatpush1.bf16.msra.mxu0 %v134
    %159 = vmatprep.subr.bf16.mxu0 0
    %160 = vmatpush1.bf16.msra.mxu0 0
    %161 = vmatprep.subr.bf16.mxu0 0
    %162 = vmatpush1.bf16.msra.mxu0 0
    %163 = vmatprep.subr.bf16.mxu0 0
    %164 = vmatpush1.bf16.msra.mxu0 0
    %165 = vmatprep.subr.bf16.mxu0 0
    %166 = vmatpush1.bf16.msra.mxu0 0
    %167 = vmatprep.subr.bf16.mxu0 0
    %168 = vmatpush1.bf16.msra.mxu0 0
    %169 = vmatprep.subr.bf16.mxu0 0
    %170 = vmatpush1.bf16.msra.mxu0 0
    %171 = vmatprep.subr.bf16.mxu0 0
    %172 = vmatpush1.bf16.msra.mxu0 0
    %173 = vmatprep.subr.bf16.mxu0 0
    %174 = vmatpush1.bf16.msra.mxu0 0
    %175 = vmatprep.mubr.bf16.mxu0 0
    %176 = vmatmul.mubr.bf16.gmra.mrb[0].mxu0 %v93
    %v177 = vpop.f32.mrb[0].mxu0
    %v178 = vadd.f32 0.0, %v177
    %v179 = vpop.f32.mrb[0].mxu0
    %v180 = vpop.f32.mrb[0].mxu0
    %v181 = vadd.f32 0.0, %v180
    %v182 = vpop.f32.mrb[0].mxu0
    %183 = vdwg.mxu0
    %v184 = vadd.f32 %v69, %v178
    %v185 = vadd.f32 %v70, %v181
    %186 = vst [vmem:[#allocation2] sm:$0xff] %v184
    %187 = vst [vmem:[#allocation2 + $0x8] sm:$0xff] %v185
    // Predicated region
    $region38: #{tpu_custom_call.1} parent=1 // pred_check
      %p188 = pneg %p63
    $region39: #{tpu_custom_call.1} parent=1 // pred_check_branch
      %190 = sbr.rel (%p188) target = $region41
    $region40: #{tpu_custom_call.1} parent=1 // pred_region
      %v191 = vld [vmem:[%s3] sm:$0xf]
      %v192 = vld [vmem:[%s3 + $0x4] sm:$0xf]
      %v193 = vld [vmem:[#allocation8] sm:$0xf]
      %v194 = vld [vmem:[#allocation8 + $0x4] sm:$0xf]
      %v195 = vld [vmem:[#allocation8 + $0x8] sm:$0xf]
      %v196 = vld [vmem:[#allocation8 + $0xc] sm:$0xf]
      %v197 = vld [vmem:[#allocation8 + $0x10] sm:$0xf]
      %v198 = vld [vmem:[#allocation8 + $0x14] sm:$0xf]
      %v199 = vld [vmem:[#allocation8 + $0x18] sm:$0xf]
      %v200 = vld [vmem:[#allocation8 + $0x1c] sm:$0xf]
      %v201 = vld [vmem:[#allocation8 + $0x20] sm:$0xf]
      %v202 = vld [vmem:[#allocation8 + $0x24] sm:$0xf]
      %v203 = vld [vmem:[#allocation8 + $0x28] sm:$0xf]
      %v204 = vld [vmem:[#allocation8 + $0x2c] sm:$0xf]
      %v205 = vld [vmem:[#allocation8 + $0x30] sm:$0xf]
      %v206 = vld [vmem:[#allocation8 + $0x34] sm:$0xf]
      %v207 = vld [vmem:[#allocation8 + $0x38] sm:$0xf]
      %v208 = vld [vmem:[#allocation8 + $0x3c] sm:$0xf]
      %v211 = vunpack.c.l.b16 %v191
      %v212 = vunpack.c.l.b16 %v192
      %v213 = vpack.c.b16 %v212, %v211
      %v231 = vunpack.c.l.b16 %v193
      %v232 = vunpack.c.l.b16 %v194
      %v233 = vunpack.c.l.b16 %v195
      %v234 = vunpack.c.l.b16 %v196
      %v235 = vunpack.c.l.b16 %v197
      %v236 = vunpack.c.l.b16 %v198
      %v237 = vunpack.c.l.b16 %v199
      %v238 = vunpack.c.l.b16 %v200
      %v239 = vunpack.c.l.b16 %v201
      %v240 = vunpack.c.l.b16 %v202
      %v241 = vunpack.c.l.b16 %v203
      %v242 = vunpack.c.l.b16 %v204
      %v243 = vunpack.c.l.b16 %v205
      %v244 = vunpack.c.l.b16 %v206
      %v245 = vunpack.c.l.b16 %v207
      %v246 = vunpack.c.l.b16 %v208
      %v247 = vpack.c.b16 %v232, %v231
      %v248 = vpack.c.b16 %v234, %v233
      %v249 = vpack.c.b16 %v236, %v235
      %v250 = vpack.c.b16 %v238, %v237
      %v251 = vpack.c.b16 %v240, %v239
      %v252 = vpack.c.b16 %v242, %v241
      %v253 = vpack.c.b16 %v244, %v243
      %v254 = vpack.c.b16 %v246, %v245
      %263 = vmatprep.subr.bf16.mxu0 0
      %264 = vmatpush1.bf16.msra.mxu0 %v247
      %265 = vmatprep.subr.bf16.mxu0 0
      %266 = vmatpush1.bf16.msra.mxu0 %v248
      %267 = vmatprep.subr.bf16.mxu0 0
      %268 = vmatpush1.bf16.msra.mxu0 %v249
      %269 = vmatprep.subr.bf16.mxu0 0
      %270 = vmatpush1.bf16.msra.mxu0 %v250
      %271 = vmatprep.subr.bf16.mxu0 0
      %272 = vmatpush1.bf16.msra.mxu0 %v251
      %273 = vmatprep.subr.bf16.mxu0 0
      %274 = vmatpush1.bf16.msra.mxu0 %v252
      %275 = vmatprep.subr.bf16.mxu0 0
      %276 = vmatpush1.bf16.msra.mxu0 %v253
      %277 = vmatprep.subr.bf16.mxu0 0
      %278 = vmatpush1.bf16.msra.mxu0 %v254
      %279 = vmatprep.subr.bf16.mxu0 0
      %280 = vmatpush1.bf16.msra.mxu0 0
      %281 = vmatprep.subr.bf16.mxu0 0
      %282 = vmatpush1.bf16.msra.mxu0 0
      %283 = vmatprep.subr.bf16.mxu0 0
      %284 = vmatpush1.bf16.msra.mxu0 0
      %285 = vmatprep.subr.bf16.mxu0 0
      %286 = vmatpush1.bf16.msra.mxu0 0
      %287 = vmatprep.subr.bf16.mxu0 0
      %288 = vmatpush1.bf16.msra.mxu0 0
      %289 = vmatprep.subr.bf16.mxu0 0
      %290 = vmatpush1.bf16.msra.mxu0 0
      %291 = vmatprep.subr.bf16.mxu0 0
      %292 = vmatpush1.bf16.msra.mxu0 0
      %293 = vmatprep.subr.bf16.mxu0 0
      %294 = vmatpush1.bf16.msra.mxu0 0
      %295 = vmatprep.mubr.bf16.mxu0 0
      %296 = vmatmul.mubr.bf16.gmra.mrb[0].mxu0 %v213
      %v297 = vpop.f32.mrb[0].mxu0
      %v298 = vadd.f32 0.0, %v297
      %v299 = vpop.f32.mrb[0].mxu0
      %v300 = vpop.f32.mrb[0].mxu0
      %v301 = vadd.f32 0.0, %v300
      %v302 = vpop.f32.mrb[0].mxu0
      %303 = vdwg.mxu0
      %v304 = vld [vmem:[#allocation2] sm:$0xff]
      %v305 = vld [vmem:[#allocation2 + $0x8] sm:$0xff]
      %v306 = vadd.f32 %v304, %v298
      %v307 = vadd.f32 %v305, %v301
      %v308 = vld [vmem:[%s2] sm:$0x1]
      %v310 = vlaneseq
      %v311 = vshrl.u32 %v310, 7
      %v312 = vsub.s32 0, %v311
      %v313 = vrot.slane %v308, %v312
      %v315 = vadd.f32 %v306, %v313
      %v316 = vadd.f32 %v307, %v313
      %v317 = vpack.c.bf16 %v316, %v315
      %v319 = vunpack.c.l.b16 %v317
      %v320 = vunpack.c.h.b16 %v317
      %v321 = vpack.c.b16 %v319, %v319
      %v322 = vpack.c.b16 %v320, %v320
      %325 = vst [vmem:[#allocation9] sm:$0xf] %v321
      %326 = vst [vmem:[#allocation9 + $0x4] sm:$0xf] %v322
    $region41: #{tpu_custom_call.1} parent=1 // pred_fallthru
      _
    // Predicated region
    $region42: #{tpu_custom_call.1} parent=1 // pred_check
      _
    $region43: #{tpu_custom_call.1} parent=1 // pred_check_branch
      %328 = sbr.rel (0) target = $region45
    $region44: #{tpu_custom_call.1} parent=1 // pred_region
      %s330 = ssub.s32 128, 128
      %331 = vsyncadd [#allocation5], %s330
      %s332 = sshll.u32 [#allocation9], 4
      %s333 = int_to_ptr.vmem [resolvable:$true] %s332
      %338 = dma.vmem_to_hbm [thread:$0]  %s333, 128, %s5, [#allocation5], 64, 64, 4
    $region45: #{tpu_custom_call.1} parent=1 // pred_fallthru
      _
    // Predicated region
    $region46: #{tpu_custom_call.1} parent=1 // pred_check
      _
    $region47: #{tpu_custom_call.1} parent=1 // pred_check_branch
      %340 = sbr.rel (0) target = $region49
    $region48: #{tpu_custom_call.1} parent=1 // pred_region
      %341 = dma.done [#allocation5], 128
    $region49: #{tpu_custom_call.1} parent=1 // pred_fallthru
      _
    %342 = vsyncpa [#allocation4], 1
    %343 = vsyncpa [#allocation7], 1
    %344 = vsyncpa [#allocation5], 1

</llo_original>
